<compile_context>
chip_gen: v7x
topology: tpu7x:2x2x1
jax: 0.10.0
libtpu: 0.0.40
codegen_flags: <defaults>
</compile_context>

<pallas_src>
import jax
import jax.numpy as jnp
import numpy as np
from jax.experimental import pallas as pl
from jax.experimental.pallas import tpu as pltpu


# ----------------------------------------------------------------------------
# Pallas kernel: one grid step = one (domain, batch-block) pair.
# Fused: feature gating -> instance gating -> union pooling -> prediction.
# ----------------------------------------------------------------------------
def _hgn_fused_kernel(item_ref, pos_ref, user_ref, w2_ref,
                      wfi_t_ref, bfi_ref, wfu_t_ref, bfu_ref,
                      ig_item_ref, ig_user_ref, ig_pos_ref,
                      out_ref):
    item = item_ref[0]              # (Bt, L, D) item embeddings of this domain
    pos = pos_ref[0]                # (Bt, L, D) position embeddings
    user = user_ref[...]            # (Bt, D)    user embeddings (shared)
    w2 = w2_ref[0]                  # (Bt, T, D) W2(items_to_predict)

    Bt, L, D = item.shape

    # ---- feature gating: sigmoid(Linear_d(item) + Linear(user)) ------------
    user_feat = jnp.dot(user, wfu_t_ref[...],
                        preferred_element_type=jnp.float32) + bfu_ref[...]   # (Bt, D)
    item2 = item.reshape(Bt * L, D)                                          # (Bt*L, D)
    item_feat = jnp.dot(item2, wfi_t_ref[0],
                        preferred_element_type=jnp.float32) + bfi_ref[0]     # (Bt*L, D)
    gate = jax.nn.sigmoid(item_feat.reshape(Bt, L, D) + user_feat[:, None, :])
    gated = item * gate                                                      # (Bt, L, D)

    # ---- instance gating -----------------------------------------------------
    s_item = jnp.sum(gated * ig_item_ref[0], axis=-1)                        # (Bt, L)  XLU lane-reduce
    s_pos = jnp.sum(pos * ig_pos_ref[...], axis=-1)                          # (Bt, L)
    s_user = jnp.dot(user, ig_user_ref[...],
                     preferred_element_type=jnp.float32)                     # (Bt, L)  MXU
    score = jax.nn.sigmoid(s_item + s_user + s_pos)                          # (Bt, L)

    # ---- union pooling (weighted mean over L) --------------------------------
    denom = jnp.sum(score, axis=-1, keepdims=True)                           # (Bt, 1)
    union = jnp.sum(gated * score[:, :, None], axis=1) / denom               # (Bt, D)

    # ---- prediction: (union + mean_L(item)) . w2^T ---------------------------
    # mean_L(item @ w2^T) == mean_L(item) @ w2^T  -> single contraction.
    v = union + jnp.mean(item, axis=1)                                       # (Bt, D)
    out_ref[0] = jnp.sum(v[:, None, :] * w2, axis=-1)                        # (Bt, T)


def hgn_scores_fused(item_all, pos_all, user_embs, w2_all,
                     wfi_t_all, bfi_all, wfu_t, bfu,
                     ig_item_all, ig_user, ig_pos, *, block_b=128):
    """All three HGN domains in one pallas_call. Returns (3, B, T) scores."""
    _, B, L, D = item_all.shape
    T = w2_all.shape[2]

    # Batch block size: whole batch if it fits, else 128 (multiple of 8).
    if B <= block_b:
        Bt = B
    else:
        Bt = (block_b // 8) * 8
    nb = pl.cdiv(B, Bt)
    Bp = nb * Bt
    if Bp != B:                                   # pad batch (sliced off below)
        pad = Bp - B
        item_all = jnp.pad(item_all, ((0, 0), (0, pad), (0, 0), (0, 0)))
        pos_all = jnp.pad(pos_all, ((0, 0), (0, pad), (0, 0), (0, 0)))
        w2_all = jnp.pad(w2_all, ((0, 0), (0, pad), (0, 0), (0, 0)))
        user_embs = jnp.pad(user_embs, ((0, pad), (0, 0)))

    out = pl.pallas_call(
        _hgn_fused_kernel,
        out_shape=jax.ShapeDtypeStruct((3, Bp, T), jnp.float32),
        grid_spec=pltpu.PrefetchScalarGridSpec(
            num_scalar_prefetch=0,
            grid=(3, nb),                                   # domain outer, batch inner
            in_specs=[
                pl.BlockSpec((1, Bt, L, D), lambda d, b: (d, b, 0, 0)),  # item_embs
                pl.BlockSpec((1, Bt, L, D), lambda d, b: (d, b, 0, 0)),  # pos_embs
                pl.BlockSpec((Bt, D), lambda d, b: (b, 0)),              # user_embs
                pl.BlockSpec((1, Bt, T, D), lambda d, b: (d, b, 0, 0)),  # w2
                pl.BlockSpec((1, D, D), lambda d, b: (d, 0, 0)),         # W_fg_item^T (per-domain)
                pl.BlockSpec((1, 1, D), lambda d, b: (d, 0, 0)),         # b_fg_item   (per-domain)
                pl.BlockSpec((D, D), lambda d, b: (0, 0)),               # W_fg_user^T (shared)
                pl.BlockSpec((1, D), lambda d, b: (0, 0)),               # b_fg_user   (shared)
                pl.BlockSpec((1, 1, D), lambda d, b: (d, 0, 0)),         # ig_item     (per-domain)
                pl.BlockSpec((D, L), lambda d, b: (0, 0)),               # ig_user     (shared)
                pl.BlockSpec((1, D), lambda d, b: (0, 0)),               # ig_pos      (shared)
            ],
            out_specs=pl.BlockSpec((1, Bt, T), lambda d, b: (d, b, 0)),
        ),
        compiler_params=pltpu.CompilerParams(
            dimension_semantics=("parallel", "parallel"),
            vmem_limit_bytes=48 * 1024 * 1024),
    )(item_all, pos_all, user_embs, w2_all,
      wfi_t_all, bfi_all, wfu_t, bfu,
      ig_item_all, ig_user, ig_pos)
    return out[:, :B]


# ----------------------------------------------------------------------------
# Full HGN_CDR forward (training branch, for_pred=False)
# ----------------------------------------------------------------------------
def hgn_cdr_forward(params, seq, x_seq, y_seq, position, x_position, y_position,
                    user_ids, items_to_predict, x_items_to_predict,
                    y_items_to_predict):
    D = params["item_emb"].shape[1]

    # Embedding lookups = glue (plain JAX gathers), stacked along a domain axis
    # in order [joint, src, tgt].
    user_embs = jnp.take(params["user_emb"], user_ids, axis=0)          # (B, D)
    item_all = jnp.stack([
        jnp.take(params["item_emb"], seq, axis=0),
        jnp.take(params["item_emb"], x_seq, axis=0),
        jnp.take(params["item_emb"], y_seq, axis=0)], axis=0)           # (3, B, L, D)
    pos_all = jnp.stack([
        jnp.take(params["pos_emb"], position, axis=0),
        jnp.take(params["pos_emb"], x_position, axis=0),
        jnp.take(params["pos_emb"], y_position, axis=0)], axis=0)       # (3, B, L, D)
    w2_all = jnp.stack([
        jnp.take(params["W2"], items_to_predict, axis=0),
        jnp.take(params["W2"], x_items_to_predict, axis=0),
        jnp.take(params["W2"], y_items_to_predict, axis=0)], axis=0)    # (3, B, T, D)

    # Per-domain weights, pre-transposed so the kernel contracts along D.
    wfi_t_all = jnp.stack([params["W_fg_item"].T,
                           params["W_fg_item_src"].T,
                           params["W_fg_item_tgt"].T], axis=0)          # (3, D, D)
    bfi_all = jnp.stack([params["b_fg_item"],
                         params["b_fg_item_src"],
                         params["b_fg_item_tgt"]], axis=0).reshape(3, 1, D)
    ig_item_all = jnp.stack([params["ig_item"],
                             params["ig_item_src"],
                             params["ig_item_tgt"]], axis=0).reshape(3, 1, D)

    out = hgn_scores_fused(
        item_all, pos_all, user_embs, w2_all,
        wfi_t_all, bfi_all,
        params["W_fg_user"].T, params["b_fg_user"].reshape(1, D),
        ig_item_all, params["ig_user"], params["ig_pos"].reshape(1, D))
    return out[0], out[1], out[2]          # (res, res_src, res_tgt), each (B, T)


# ----------------------------------------------------------------------------
# Pure-JAX reference for verification
# ----------------------------------------------------------------------------
def _ref_domain(item_embs, pos_embs, user_embs, W_fg_item, b_fg_item,
                W_fg_user, b_fg_user, ig_item, ig_user, ig_pos, w2):
    user_feat = user_embs @ W_fg_user.T + b_fg_user
    gate = jax.nn.sigmoid(item_embs @ W_fg_item.T + b_fg_item + user_feat[:, None, :])
    gated = item_embs * gate
    score = jax.nn.sigmoid(
        jnp.squeeze(gated @ ig_item, -1)
        + user_embs @ ig_user
        + jnp.squeeze(pos_embs @ ig_pos, -1))
    union = jnp.sum(gated * score[:, :, None], axis=1) / jnp.sum(score, axis=1, keepdims=True)
    res = jnp.einsum("bd,btd->bt", union, w2)
    rel = jnp.mean(jnp.einsum("bld,btd->blt", item_embs, w2), axis=1)
    return res + rel


def hgn_cdr_reference(params, seq, x_seq, y_seq, position, x_position, y_position,
                      user_ids, items_to_predict, x_items_to_predict,
                      y_items_to_predict):
    user_embs = jnp.take(params["user_emb"], user_ids, axis=0)

    def dom(s, p, wk, bk, igk, ipred):
        return _ref_domain(
            jnp.take(params["item_emb"], s, axis=0),
            jnp.take(params["pos_emb"], p, axis=0),
            user_embs, params[wk], params[bk],
            params["W_fg_user"], params["b_fg_user"],
            params[igk], params["ig_user"], params["ig_pos"],
            jnp.take(params["W2"], ipred, axis=0))

    res = dom(seq, position, "W_fg_item", "b_fg_item", "ig_item", items_to_predict)
    res_src = dom(x_seq, x_position, "W_fg_item_src", "b_fg_item_src",
                  "ig_item_src", x_items_to_predict)
    res_tgt = dom(y_seq, y_position, "W_fg_item_tgt", "b_fg_item_tgt",
                  "ig_item_tgt", y_items_to_predict)
    return res, res_src, res_tgt


# ----------------------------------------------------------------------------
# Deterministic parameter / input construction
# ----------------------------------------------------------------------------
def make_params(key, user_num, item_num, L, D):
    ks = jax.random.split(key, 16)
    normal = lambda k, shape, std: std * jax.random.normal(k, shape, jnp.float32)

    item_emb = normal(ks[0], (item_num, D), 1.0 / D)
    item_emb = item_emb.at[item_num - 1].set(0.0)            # padding_idx
    pos_emb = normal(ks[1], (L + 1, D), 1.0 / D)
    pos_emb = pos_emb.at[0].set(0.0)                         # padding_idx
    W2 = normal(ks[2], (item_num, D), 1.0 / D)
    W2 = W2.at[item_num - 1].set(0.0)                        # padding_idx

    def xavier(k, shape):
        fan_in, fan_out = shape[1], shape[0]
        bound = float(np.sqrt(6.0 / (fan_in + fan_out)))
        return jax.random.uniform(k, shape, jnp.float32, -bound, bound)

    params = dict(
        user_emb=normal(ks[3], (user_num, D), 1.0 / D),
        item_emb=item_emb,
        pos_emb=pos_emb,
        W2=W2,
        b2=jnp.zeros((item_num, 1), jnp.float32),
        W_fg_user=xavier(ks[4], (D, D)),
        b_fg_user=0.01 * jax.random.normal(ks[5], (D,), jnp.float32),
        W_fg_item_src=xavier(ks[6], (D, D)),
        b_fg_item_src=0.01 * jax.random.normal(ks[7], (D,), jnp.float32),
        W_fg_item_tgt=xavier(ks[8], (D, D)),
        b_fg_item_tgt=0.01 * jax.random.normal(ks[9], (D,), jnp.float32),
        W_fg_item=xavier(ks[10], (D, D)),
        b_fg_item=0.01 * jax.random.normal(ks[11], (D,), jnp.float32),
        ig_user=xavier(ks[12], (D, L)),
        ig_pos=xavier(ks[13], (D, 1)),
        ig_item_src=xavier(ks[14], (D, 1)),
        ig_item_tgt=xavier(ks[15], (D, 1)),
        ig_item=xavier(jax.random.fold_in(key, 99), (D, 1)),
    )
    return params


if __name__ == "__main__":
    B, L, D, T = 2, 8, 32, 16
    user_num, item_num = 10, 50

    key = jax.random.PRNGKey(0)
    pkey, ikey = jax.random.split(key)
    params = make_params(pkey, user_num, item_num, L, D)

    iks = jax.random.split(ikey, 10)
    seq = jax.random.randint(iks[0], (B, L), 0, item_num - 1)
    x_seq = jax.random.randint(iks[1], (B, L), 0, item_num - 1)
    y_seq = jax.random.randint(iks[2], (B, L), 0, item_num - 1)
    position = jax.random.randint(iks[3], (B, L), 1, L + 1)
    x_position = jax.random.randint(iks[4], (B, L), 1, L + 1)
    y_position = jax.random.randint(iks[5], (B, L), 1, L + 1)
    user_ids = jax.random.randint(iks[6], (B,), 0, user_num)
    items_to_predict = jax.random.randint(iks[7], (B, T), 0, item_num - 1)
    x_items_to_predict = jax.random.randint(iks[8], (B, T), 0, item_num - 1)
    y_items_to_predict = jax.random.randint(iks[9], (B, T), 0, item_num - 1)

    args = (params, seq, x_seq, y_seq, position, x_position, y_position,
            user_ids, items_to_predict, x_items_to_predict, y_items_to_predict)

    res, res_src, res_tgt = jax.block_until_ready(hgn_cdr_forward(*args))
    ref, ref_src, ref_tgt = jax.block_until_ready(hgn_cdr_reference(*args))

    np.testing.assert_allclose(np.asarray(res), np.asarray(ref), rtol=1e-5, atol=1e-5)
    np.testing.assert_allclose(np.asarray(res_src), np.asarray(ref_src), rtol=1e-5, atol=1e-5)
    np.testing.assert_allclose(np.asarray(res_tgt), np.asarray(ref_tgt), rtol=1e-5, atol=1e-5)

    print("KERNEL_OK")
</pallas_src>

<mosaic_0001>
module attributes {stable_mosaic.version = 11 : i64} {
  func.func @_hgn_fused_kernel(%arg0: i32, %arg1: i32, %arg2: memref<1x2x8x32xf32, #tpu.memory_space<vmem>>, %arg3: memref<1x2x8x32xf32, #tpu.memory_space<vmem>>, %arg4: memref<2x32xf32, #tpu.memory_space<vmem>>, %arg5: memref<1x2x16x32xf32, #tpu.memory_space<vmem>>, %arg6: memref<1x32x32xf32, #tpu.memory_space<vmem>>, %arg7: memref<1x1x32xf32, #tpu.memory_space<vmem>>, %arg8: memref<32x32xf32, #tpu.memory_space<vmem>>, %arg9: memref<1x32xf32, #tpu.memory_space<vmem>>, %arg10: memref<1x1x32xf32, #tpu.memory_space<vmem>>, %arg11: memref<32x8xf32, #tpu.memory_space<vmem>>, %arg12: memref<1x32xf32, #tpu.memory_space<vmem>>, %arg13: memref<1x2x16xf32, #tpu.memory_space<vmem>>) attributes {dimension_semantics = [#tpu.dimension_semantics<parallel>, #tpu.dimension_semantics<parallel>], iteration_bounds = array<i64: 3, 1>, scalar_prefetch = 0 : i64, scratch_operands = 0 : i64, tpu.core_type = #tpu.core_type<tc>, window_params = [{transform_indices = @transform_0, window_bounds = array<i64: 1, 2, 8, 32>}, {transform_indices = @transform_1, window_bounds = array<i64: 1, 2, 8, 32>}, {transform_indices = @transform_2, window_bounds = array<i64: 2, 32>}, {transform_indices = @transform_3, window_bounds = array<i64: 1, 2, 16, 32>}, {transform_indices = @transform_4, window_bounds = array<i64: 1, 32, 32>}, {transform_indices = @transform_5, window_bounds = array<i64: 1, 1, 32>}, {pipeline_mode = #tpu.pipeline_mode<synchronous>, transform_indices = @transform_6, window_bounds = array<i64: 32, 32>}, {pipeline_mode = #tpu.pipeline_mode<synchronous>, transform_indices = @transform_7, window_bounds = array<i64: 1, 32>}, {transform_indices = @transform_8, window_bounds = array<i64: 1, 1, 32>}, {pipeline_mode = #tpu.pipeline_mode<synchronous>, transform_indices = @transform_9, window_bounds = array<i64: 32, 8>}, {pipeline_mode = #tpu.pipeline_mode<synchronous>, transform_indices = @transform_10, window_bounds = array<i64: 1, 32>}, {transform_indices = @transform_11, window_bounds = array<i64: 1, 2, 16>}]} {
    %c0 = arith.constant 0 : index
    %c0_0 = arith.constant 0 : index
    %c0_1 = arith.constant 0 : index
    %c0_2 = arith.constant 0 : index
    %0 = vector.load %arg2[%c0, %c0_0, %c0_1, %c0_2] : memref<1x2x8x32xf32, #tpu.memory_space<vmem>>, vector<1x2x8x32xf32>
    %1 = vector.shape_cast %0 : vector<1x2x8x32xf32> to vector<2x8x32xf32>
    %c0_3 = arith.constant 0 : index
    %c0_4 = arith.constant 0 : index
    %c0_5 = arith.constant 0 : index
    %c0_6 = arith.constant 0 : index
    %2 = vector.load %arg3[%c0_3, %c0_4, %c0_5, %c0_6] : memref<1x2x8x32xf32, #tpu.memory_space<vmem>>, vector<1x2x8x32xf32>
    %3 = vector.shape_cast %2 : vector<1x2x8x32xf32> to vector<2x8x32xf32>
    %c0_7 = arith.constant 0 : index
    %c0_8 = arith.constant 0 : index
    %4 = vector.load %arg4[%c0_7, %c0_8] : memref<2x32xf32, #tpu.memory_space<vmem>>, vector<2x32xf32>
    %c0_9 = arith.constant 0 : index
    %c0_10 = arith.constant 0 : index
    %c0_11 = arith.constant 0 : index
    %c0_12 = arith.constant 0 : index
    %5 = vector.load %arg5[%c0_9, %c0_10, %c0_11, %c0_12] : memref<1x2x16x32xf32, #tpu.memory_space<vmem>>, vector<1x2x16x32xf32>
    %6 = vector.shape_cast %5 : vector<1x2x16x32xf32> to vector<2x16x32xf32>
    %c0_13 = arith.constant 0 : index
    %c0_14 = arith.constant 0 : index
    %7 = vector.load %arg8[%c0_13, %c0_14] : memref<32x32xf32, #tpu.memory_space<vmem>>, vector<32x32xf32>
    %cst = arith.constant dense<0.000000e+00> : vector<2x32xf32>
    %8 = tpu.matmul %4, %7, %cst {dimension_numbers = #tpu.dot_dimension_numbers<[1], [0], [0], [1], [0, 0, 1, 1], [], []>} : vector<2x32xf32>, vector<32x32xf32>, vector<2x32xf32> -> vector<2x32xf32>
    %c0_15 = arith.constant 0 : index
    %c0_16 = arith.constant 0 : index
    %9 = vector.load %arg9[%c0_15, %c0_16] : memref<1x32xf32, #tpu.memory_space<vmem>>, vector<1x32xf32>
    %10 = vector.broadcast %9 : vector<1x32xf32> to vector<2x32xf32>
    %11 = arith.addf %8, %10 : vector<2x32xf32>
    %12 = vector.shape_cast %1 : vector<2x8x32xf32> to vector<16x32xf32>
    %c0_17 = arith.constant 0 : index
    %c0_18 = arith.constant 0 : index
    %c0_19 = arith.constant 0 : index
    %13 = vector.load %arg6[%c0_17, %c0_18, %c0_19] : memref<1x32x32xf32, #tpu.memory_space<vmem>>, vector<1x32x32xf32>
    %14 = vector.shape_cast %13 : vector<1x32x32xf32> to vector<32x32xf32>
    %cst_20 = arith.constant dense<0.000000e+00> : vector<16x32xf32>
    %15 = tpu.matmul %12, %14, %cst_20 {dimension_numbers = #tpu.dot_dimension_numbers<[1], [0], [0], [1], [0, 0, 1, 1], [], []>} : vector<16x32xf32>, vector<32x32xf32>, vector<16x32xf32> -> vector<16x32xf32>
    %c0_21 = arith.constant 0 : index
    %c0_22 = arith.constant 0 : index
    %c0_23 = arith.constant 0 : index
    %16 = vector.load %arg7[%c0_21, %c0_22, %c0_23] : memref<1x1x32xf32, #tpu.memory_space<vmem>>, vector<1x1x32xf32>
    %17 = vector.shape_cast %16 : vector<1x1x32xf32> to vector<1x32xf32>
    %18 = vector.broadcast %17 : vector<1x32xf32> to vector<16x32xf32>
    %19 = arith.addf %15, %18 : vector<16x32xf32>
    %20 = vector.shape_cast %19 : vector<16x32xf32> to vector<2x8x32xf32>
    %21 = vector.shape_cast %11 : vector<2x32xf32> to vector<2x1x32xf32>
    %22 = vector.broadcast %21 : vector<2x1x32xf32> to vector<2x8x32xf32>
    %23 = arith.addf %20, %22 : vector<2x8x32xf32>
    %24 = arith.negf %23 : vector<2x8x32xf32>
    %25 = math.exp %24 : vector<2x8x32xf32>
    %cst_24 = arith.constant 1.000000e+00 : f32
    %26 = vector.broadcast %cst_24 : f32 to vector<2x8x32xf32>
    %27 = arith.addf %26, %25 : vector<2x8x32xf32>
    %28 = arith.divf %26, %27 : vector<2x8x32xf32>
    %29 = arith.mulf %1, %28 : vector<2x8x32xf32>
    %c0_25 = arith.constant 0 : index
    %c0_26 = arith.constant 0 : index
    %c0_27 = arith.constant 0 : index
    %30 = vector.load %arg10[%c0_25, %c0_26, %c0_27] : memref<1x1x32xf32, #tpu.memory_space<vmem>>, vector<1x1x32xf32>
    %31 = vector.shape_cast %30 : vector<1x1x32xf32> to vector<1x32xf32>
    %32 = vector.shape_cast %31 : vector<1x32xf32> to vector<1x1x32xf32>
    %33 = vector.broadcast %32 : vector<1x1x32xf32> to vector<2x8x32xf32>
    %34 = arith.mulf %29, %33 : vector<2x8x32xf32>
    %cst_28 = arith.constant dense<0.000000e+00> : vector<2x8xf32>
    %35 = vector.multi_reduction <add>, %34, %cst_28 [2] : vector<2x8x32xf32> to vector<2x8xf32>
    %c0_29 = arith.constant 0 : index
    %c0_30 = arith.constant 0 : index
    %36 = vector.load %arg12[%c0_29, %c0_30] : memref<1x32xf32, #tpu.memory_space<vmem>>, vector<1x32xf32>
    %37 = vector.shape_cast %36 : vector<1x32xf32> to vector<1x1x32xf32>
    %38 = vector.broadcast %37 : vector<1x1x32xf32> to vector<2x8x32xf32>
    %39 = arith.mulf %3, %38 : vector<2x8x32xf32>
    %cst_31 = arith.constant dense<0.000000e+00> : vector<2x8xf32>
    %40 = vector.multi_reduction <add>, %39, %cst_31 [2] : vector<2x8x32xf32> to vector<2x8xf32>
    %c0_32 = arith.constant 0 : index
    %c0_33 = arith.constant 0 : index
    %41 = vector.load %arg11[%c0_32, %c0_33] : memref<32x8xf32, #tpu.memory_space<vmem>>, vector<32x8xf32>
    %cst_34 = arith.constant dense<0.000000e+00> : vector<2x8xf32>
    %42 = tpu.matmul %4, %41, %cst_34 {dimension_numbers = #tpu.dot_dimension_numbers<[1], [0], [0], [1], [0, 0, 1, 1], [], []>} : vector<2x32xf32>, vector<32x8xf32>, vector<2x8xf32> -> vector<2x8xf32>
    %43 = arith.addf %35, %42 : vector<2x8xf32>
    %44 = arith.addf %43, %40 : vector<2x8xf32>
    %45 = arith.negf %44 : vector<2x8xf32>
    %46 = math.exp %45 : vector<2x8xf32>
    %cst_35 = arith.constant 1.000000e+00 : f32
    %47 = vector.broadcast %cst_35 : f32 to vector<2x8xf32>
    %48 = arith.addf %47, %46 : vector<2x8xf32>
    %49 = arith.divf %47, %48 : vector<2x8xf32>
    %cst_36 = arith.constant dense<0.000000e+00> : vector<2xf32>
    %50 = vector.multi_reduction <add>, %49, %cst_36 [1] : vector<2x8xf32> to vector<2xf32>
    %51 = vector.shape_cast %50 : vector<2xf32> to vector<2x1xf32>
    %52 = vector.shape_cast %49 : vector<2x8xf32> to vector<2x8x1xf32>
    %53 = vector.broadcast %52 : vector<2x8x1xf32> to vector<2x8x32xf32>
    %54 = arith.mulf %29, %53 : vector<2x8x32xf32>
    %cst_37 = arith.constant dense<0.000000e+00> : vector<2x32xf32>
    %55 = vector.multi_reduction <add>, %54, %cst_37 [1] : vector<2x8x32xf32> to vector<2x32xf32>
    %56 = vector.broadcast %51 : vector<2x1xf32> to vector<2x32xf32>
    %57 = arith.divf %55, %56 : vector<2x32xf32>
    %cst_38 = arith.constant dense<0.000000e+00> : vector<2x32xf32>
    %58 = vector.multi_reduction <add>, %1, %cst_38 [1] : vector<2x8x32xf32> to vector<2x32xf32>
    %cst_39 = arith.constant 8.000000e+00 : f32
    %59 = vector.broadcast %cst_39 : f32 to vector<2x32xf32>
    %60 = arith.divf %58, %59 : vector<2x32xf32>
    %61 = arith.addf %57, %60 : vector<2x32xf32>
    %62 = vector.shape_cast %61 : vector<2x32xf32> to vector<2x1x32xf32>
    %63 = vector.broadcast %62 : vector<2x1x32xf32> to vector<2x16x32xf32>
    %64 = arith.mulf %63, %6 : vector<2x16x32xf32>
    %cst_40 = arith.constant dense<0.000000e+00> : vector<2x16xf32>
    %65 = vector.multi_reduction <add>, %64, %cst_40 [2] : vector<2x16x32xf32> to vector<2x16xf32>
    %c0_41 = arith.constant 0 : index
    %c0_42 = arith.constant 0 : index
    %c0_43 = arith.constant 0 : index
    %66 = vector.load %arg13[%c0_41, %c0_42, %c0_43] : memref<1x2x16xf32, #tpu.memory_space<vmem>>, vector<1x2x16xf32>
    %67 = vector.shape_cast %66 : vector<1x2x16xf32> to vector<2x16xf32>
    %68 = vector.shape_cast %65 : vector<2x16xf32> to vector<1x2x16xf32>
    tpu.vector_store %arg13[%c0_41, %c0_42, %c0_43], %68 {strides = array<i32>} : memref<1x2x16xf32, #tpu.memory_space<vmem>>, vector<1x2x16xf32>,
    return
  }
  func.func @transform_0(%arg0: i32, %arg1: i32) -> (i32, i32, i32, i32) {
    %c0_i32 = arith.constant 0 : i32
    %c0_i32_0 = arith.constant 0 : i32
    %c0_i32_1 = arith.constant 0 : i32
    return %arg0, %arg1, %c0_i32, %c0_i32_0 : i32, i32, i32, i32
  }
  func.func @transform_1(%arg0: i32, %arg1: i32) -> (i32, i32, i32, i32) {
    %c0_i32 = arith.constant 0 : i32
    %c0_i32_0 = arith.constant 0 : i32
    %c0_i32_1 = arith.constant 0 : i32
    return %arg0, %arg1, %c0_i32, %c0_i32_0 : i32, i32, i32, i32
  }
  func.func @transform_2(%arg0: i32, %arg1: i32) -> (i32, i32) {
    %c0_i32 = arith.constant 0 : i32
    %c0_i32_0 = arith.constant 0 : i32
    return %arg1, %c0_i32 : i32, i32
  }
  func.func @transform_3(%arg0: i32, %arg1: i32) -> (i32, i32, i32, i32) {
    %c0_i32 = arith.constant 0 : i32
    %c0_i32_0 = arith.constant 0 : i32
    %c0_i32_1 = arith.constant 0 : i32
    return %arg0, %arg1, %c0_i32, %c0_i32_0 : i32, i32, i32, i32
  }
  func.func @transform_4(%arg0: i32, %arg1: i32) -> (i32, i32, i32) {
    %c0_i32 = arith.constant 0 : i32
    %c0_i32_0 = arith.constant 0 : i32
    %c0_i32_1 = arith.constant 0 : i32
    return %arg0, %c0_i32, %c0_i32_0 : i32, i32, i32
  }
  func.func @transform_5(%arg0: i32, %arg1: i32) -> (i32, i32, i32) {
    %c0_i32 = arith.constant 0 : i32
    %c0_i32_0 = arith.constant 0 : i32
    %c0_i32_1 = arith.constant 0 : i32
    return %arg0, %c0_i32, %c0_i32_0 : i32, i32, i32
  }
  func.func @transform_6(%arg0: i32, %arg1: i32) -> (i32, i32) {
    %c0_i32 = arith.constant 0 : i32
    %c0_i32_0 = arith.constant 0 : i32
    %c0_i32_1 = arith.constant 0 : i32
    return %c0_i32, %c0_i32_0 : i32, i32
  }
  func.func @transform_7(%arg0: i32, %arg1: i32) -> (i32, i32) {
    %c0_i32 = arith.constant 0 : i32
    %c0_i32_0 = arith.constant 0 : i32
    %c0_i32_1 = arith.constant 0 : i32
    return %c0_i32, %c0_i32_0 : i32, i32
  }
  func.func @transform_8(%arg0: i32, %arg1: i32) -> (i32, i32, i32) {
    %c0_i32 = arith.constant 0 : i32
    %c0_i32_0 = arith.constant 0 : i32
    %c0_i32_1 = arith.constant 0 : i32
    return %arg0, %c0_i32, %c0_i32_0 : i32, i32, i32
  }
  func.func @transform_9(%arg0: i32, %arg1: i32) -> (i32, i32) {
    %c0_i32 = arith.constant 0 : i32
    %c0_i32_0 = arith.constant 0 : i32
    %c0_i32_1 = arith.constant 0 : i32
    return %c0_i32, %c0_i32_0 : i32, i32
  }
  func.func @transform_10(%arg0: i32, %arg1: i32) -> (i32, i32) {
    %c0_i32 = arith.constant 0 : i32
    %c0_i32_0 = arith.constant 0 : i32
    %c0_i32_1 = arith.constant 0 : i32
    return %c0_i32, %c0_i32_0 : i32, i32
  }
  func.func @transform_11(%arg0: i32, %arg1: i32) -> (i32, i32, i32) {
    %c0_i32 = arith.constant 0 : i32
    %c0_i32_0 = arith.constant 0 : i32
    return %arg0, %arg1, %c0_i32 : i32, i32, i32
  }
}

</mosaic_0001>

<llo_original>
// kernel: tpu_custom_call.1
$region0: #{tpu_custom_call.1}
  #allocation0 [shape = 'u32[]', space=smem, size = 0x4, offset = 0x4, fixed_abs, tag = 'smem constant byte address 0x4 - core index']
  #allocation1 [shape = 'u32[144,128]{1,0:T(1,128)}', space=vmem, size = 0x12000, scoped, tag = 'internal scratch']
  %s0 = inlined_call_operand.hbm [shape: f32[3,2,8,32], index: 0, kind: input, shape index: {}]
  %s1 = inlined_call_operand.hbm [shape: f32[3,2,8,32], index: 1, kind: input, shape index: {}]
  %s2 = inlined_call_operand.vmem [shape: f32[2,32], index: 2, kind: input, shape index: {}]
  %s3 = inlined_call_operand.hbm [shape: f32[3,2,16,32], index: 3, kind: input, shape index: {}]
  %s4 = inlined_call_operand.hbm [shape: f32[3,32,32], index: 4, kind: input, shape index: {}]
  %s5 = inlined_call_operand.vmem [shape: f32[3,1,32], index: 5, kind: input, shape index: {}]
  %s6 = inlined_call_operand.vmem [shape: f32[32,32], index: 6, kind: input, shape index: {}]
  %s7 = inlined_call_operand.vmem [shape: f32[1,32], index: 7, kind: input, shape index: {}]
  %s8 = inlined_call_operand.vmem [shape: f32[3,1,32], index: 8, kind: input, shape index: {}]
  %s9 = inlined_call_operand.vmem [shape: f32[32,8], index: 9, kind: input, shape index: {}]
  %s10 = inlined_call_operand.vmem [shape: f32[1,32], index: 10, kind: input, shape index: {}]
  %s11 = inlined_call_operand.hbm [shape: f32[3,2,16], index: 11, kind: output, shape index: {}]
  %s12 = sld [smem:[#allocation0]]
  $region93: #{tpu_custom_call.1} parent=0
    _
  %s14 = ssub.s32 1, %s12
  %s15 = scalar_select 0, %s14, %s12
  $region1: #{tpu_custom_call.1} parent=0
    #allocation2 [shape = 'u8[16384]{0}', space=vmem, size = 0x4000, scoped, tag = 'input window, operand 0']
    #allocation3 [shape = 's32[2]{0}', space=sflag, size = 0x8, scoped, tag = 'scoped memory for tpu_custom_call.1']
    #allocation4 [shape = 's32[2]{0}', space=sflag, size = 0x8, scoped, tag = 'scoped memory for tpu_custom_call.1']
    #allocation5 [shape = 'u8[16384]{0}', space=vmem, size = 0x4000, scoped, tag = 'input window, operand 1']
    #allocation6 [shape = 's32[2]{0}', space=sflag, size = 0x8, scoped, tag = 'scoped memory for tpu_custom_call.1']
    #allocation7 [shape = 'u8[32768]{0}', space=vmem, size = 0x8000, scoped, tag = 'input window, operand 3']
    #allocation8 [shape = 'u8[32768]{0}', space=vmem, size = 0x8000, scoped, tag = 'input window, operand 4']
    #allocation9 [shape = 's32[2]{0}', space=sflag, size = 0x8, scoped, tag = 'scoped memory for tpu_custom_call.1']
    #allocation10 [shape = 'u8[2048]{0}', space=vmem, size = 0x800, scoped, tag = 'output window, operand 0']
    %16 = vsyncpa [#allocation3], 0
    %s17 = scalar_lea.sflag [#allocation3], 1
    %18 = vsyncpa %s17, 0
    %19 = vsyncpa [#allocation6], 0
    %s20 = scalar_lea.sflag [#allocation6], 1
    %21 = vsyncpa %s20, 0
    %22 = vsyncpa [#allocation9], 0
    %s23 = scalar_lea.sflag [#allocation9], 1
    %24 = vsyncpa %s23, 0
    %25 = vsyncpa [#allocation4], 0
    %s26 = scalar_lea.sflag [#allocation4], 1
    %27 = vsyncpa %s26, 0
    loop: start=0, step=1, limit=5
    $region2: #{tpu_custom_call.1} parent=1 // loop_pre_header
      _
    $region3: #{tpu_custom_call.1} parent=1 // loop_header
      %s29 = sphi 0, %s33
      %p30 = scmp.ge.s32.totalorder %s29, 5
      %s36 = sphi 0, %s48
      %s37 = sphi 0, %s44
      %s38 = sphi 0, %s36
      %s39 = sphi 0, %s37
      %s40 = sphi 0, %s38
      %s41 = sphi 0, %s39
      %s53 = sphi 0, %s55
      %s56 = sphi 0, %s53
      %s57 = sphi 0, %s56
      %s73 = sphi 0, %s57
      %s81 = sphi 0, %s83
      %s84 = sphi 0, %s81
      %s85 = sphi 0, %s84
      %s101 = sphi 0, %s85
      %s107 = sphi 0, %s109
      %s110 = sphi 0, %s107
      %s111 = sphi 0, %s110
      %s127 = sphi 0, %s111
      %s135 = sphi 0, %s137
      %s138 = sphi 0, %s135
      %s139 = sphi 0, %s138
      %s155 = sphi 0, %s139
      %s161 = sphi 0, %s163
      %s164 = sphi 0, %s161
      %s165 = sphi 0, %s164
      %s181 = sphi 0, %s165
      %s187 = sphi 0, %s189
      %s190 = sphi 0, %s187
      %s191 = sphi 0, %s190
      %s207 = sphi 0, %s191
      %s211 = sphi 0, %s211
      %s213 = sphi 0, %s211
      %s214 = sphi 0, %s213
      %s228 = sphi 0, %s214
      %s232 = sphi 0, %s232
      %s234 = sphi 0, %s232
      %s235 = sphi 0, %s234
      %s249 = sphi 0, %s235
      %s255 = sphi 0, %s257
      %s258 = sphi 0, %s255
      %s259 = sphi 0, %s258
      %s275 = sphi 0, %s259
      %s279 = sphi 0, %s279
      %s281 = sphi 0, %s279
      %s282 = sphi 0, %s281
      %s296 = sphi 0, %s282
      %s300 = sphi 0, %s300
      %s302 = sphi 0, %s300
      %s303 = sphi 0, %s302
      %s317 = sphi 0, %s303
      %s325 = sphi 0, %s327
      %s328 = sphi 0, %s325
      %s329 = sphi 0, %s328
      %s345 = sphi 0, %s329
    $region4: #{tpu_custom_call.1} parent=1 // loop_header_branch
      %32 = sbr.rel (%p30) target = $region8
    $region5: #{tpu_custom_call.1} parent=1 // loop_body
      %s34 = ssub.s32 %s29, 1
      %s35 = ssub.s32 %s29, 2
      %s42 = sadd.s32 1, %s37
      %p43 = scmp.ge.s32.totalorder %s42, 1
      %s44 = scalar_select %p43, 0, %s42
      %s45 = sadd.s32 1, %s36
      %s46 = scalar_select %p43, %s45, %s36
      %p47 = scmp.ge.s32.totalorder %s46, 3
      %s48 = scalar_select %p47, 0, %s46
      %s49 = ssub.s32 %s36, %s48
      %s50 = ssub.s32 %s37, %s44
      %s51 = sor.u32 %s49, %s50
      %p52 = scmp.eq.s32.totalorder %s51, 0
      %s54 = sadd.s32 %s53, 1
      %s55 = scalar_select %p52, %s53, %s54
      %p58 = pneg %p52
      %p59 = scmp.eq.s32.totalorder %s29, 2
      %p60 = por %p58, %p59
      %p61 = scmp.ne.s32.totalorder %s53, %s56
      %p62 = scmp.eq.s32.totalorder %s29, 0
      %p63 = por %p61, %p62
      %p64 = scmp.ne.s32.totalorder %s53, %s56
      %p65 = scmp.eq.s32.totalorder %s34, 2
      %p66 = por %p64, %p65
      %p67 = scmp.ne.s32.totalorder %s56, %s57
      %p68 = scmp.eq.s32.totalorder %s34, 0
      %p69 = por %p67, %p68
      %p70 = scmp.ne.s32.totalorder %s56, %s57
      %p71 = scmp.eq.s32.totalorder %s35, 2
      %p72 = por %p70, %p71
      %p74 = scmp.ne.s32.totalorder %s57, %s73
      %p75 = scmp.eq.s32.totalorder %s35, 0
      %p76 = por %p74, %p75
      %s77 = ssub.s32 %s36, %s48
      %s78 = ssub.s32 %s37, %s44
      %s79 = sor.u32 %s77, %s78
      %p80 = scmp.eq.s32.totalorder %s79, 0
      %s82 = sadd.s32 %s81, 1
      %s83 = scalar_select %p80, %s81, %s82
      %p86 = pneg %p80
      %p87 = scmp.eq.s32.totalorder %s29, 2
      %p88 = por %p86, %p87
      %p89 = scmp.ne.s32.totalorder %s81, %s84
      %p90 = scmp.eq.s32.totalorder %s29, 0
      %p91 = por %p89, %p90
      %p92 = scmp.ne.s32.totalorder %s81, %s84
      %p93 = scmp.eq.s32.totalorder %s34, 2
      %p94 = por %p92, %p93
      %p95 = scmp.ne.s32.totalorder %s84, %s85
      %p96 = scmp.eq.s32.totalorder %s34, 0
      %p97 = por %p95, %p96
      %p98 = scmp.ne.s32.totalorder %s84, %s85
      %p99 = scmp.eq.s32.totalorder %s35, 2
      %p100 = por %p98, %p99
      %p102 = scmp.ne.s32.totalorder %s85, %s101
      %p103 = scmp.eq.s32.totalorder %s35, 0
      %p104 = por %p102, %p103
      %s105 = ssub.s32 %s37, %s44
      %p106 = scmp.eq.s32.totalorder %s105, 0
      %s108 = sadd.s32 %s107, 1
      %s109 = scalar_select %p106, %s107, %s108
      %p112 = pneg %p106
      %p113 = scmp.eq.s32.totalorder %s29, 2
      %p114 = por %p112, %p113
      %p115 = scmp.ne.s32.totalorder %s107, %s110
      %p116 = scmp.eq.s32.totalorder %s29, 0
      %p117 = por %p115, %p116
      %p118 = scmp.ne.s32.totalorder %s107, %s110
      %p119 = scmp.eq.s32.totalorder %s34, 2
      %p120 = por %p118, %p119
      %p121 = scmp.ne.s32.totalorder %s110, %s111
      %p122 = scmp.eq.s32.totalorder %s34, 0
      %p123 = por %p121, %p122
      %p124 = scmp.ne.s32.totalorder %s110, %s111
      %p125 = scmp.eq.s32.totalorder %s35, 2
      %p126 = por %p124, %p125
      %p128 = scmp.ne.s32.totalorder %s111, %s127
      %p129 = scmp.eq.s32.totalorder %s35, 0
      %p130 = por %p128, %p129
      %s131 = ssub.s32 %s36, %s48
      %s132 = ssub.s32 %s37, %s44
      %s133 = sor.u32 %s131, %s132
      %p134 = scmp.eq.s32.totalorder %s133, 0
      %s136 = sadd.s32 %s135, 1
      %s137 = scalar_select %p134, %s135, %s136
      %p140 = pneg %p134
      %p141 = scmp.eq.s32.totalorder %s29, 2
      %p142 = por %p140, %p141
      %p143 = scmp.ne.s32.totalorder %s135, %s138
      %p144 = scmp.eq.s32.totalorder %s29, 0
      %p145 = por %p143, %p144
      %p146 = scmp.ne.s32.totalorder %s135, %s138
      %p147 = scmp.eq.s32.totalorder %s34, 2
      %p148 = por %p146, %p147
      %p149 = scmp.ne.s32.totalorder %s138, %s139
      %p150 = scmp.eq.s32.totalorder %s34, 0
      %p151 = por %p149, %p150
      %p152 = scmp.ne.s32.totalorder %s138, %s139
      %p153 = scmp.eq.s32.totalorder %s35, 2
      %p154 = por %p152, %p153
      %p156 = scmp.ne.s32.totalorder %s139, %s155
      %p157 = scmp.eq.s32.totalorder %s35, 0
      %p158 = por %p156, %p157
      %s159 = ssub.s32 %s36, %s48
      %p160 = scmp.eq.s32.totalorder %s159, 0
      %s162 = sadd.s32 %s161, 1
      %s163 = scalar_select %p160, %s161, %s162
      %p166 = pneg %p160
      %p167 = scmp.eq.s32.totalorder %s29, 2
      %p168 = por %p166, %p167
      %p169 = scmp.ne.s32.totalorder %s161, %s164
      %p170 = scmp.eq.s32.totalorder %s29, 0
      %p171 = por %p169, %p170
      %p172 = scmp.ne.s32.totalorder %s161, %s164
      %p173 = scmp.eq.s32.totalorder %s34, 2
      %p174 = por %p172, %p173
      %p175 = scmp.ne.s32.totalorder %s164, %s165
      %p176 = scmp.eq.s32.totalorder %s34, 0
      %p177 = por %p175, %p176
      %p178 = scmp.ne.s32.totalorder %s164, %s165
      %p179 = scmp.eq.s32.totalorder %s35, 2
      %p180 = por %p178, %p179
      %p182 = scmp.ne.s32.totalorder %s165, %s181
      %p183 = scmp.eq.s32.totalorder %s35, 0
      %p184 = por %p182, %p183
      %s185 = ssub.s32 %s36, %s48
      %p186 = scmp.eq.s32.totalorder %s185, 0
      %s188 = sadd.s32 %s187, 1
      %s189 = scalar_select %p186, %s187, %s188
      %p192 = pneg %p186
      %p193 = scmp.eq.s32.totalorder %s29, 2
      %p194 = por %p192, %p193
      %p195 = scmp.ne.s32.totalorder %s187, %s190
      %p196 = scmp.eq.s32.totalorder %s29, 0
      %p197 = por %p195, %p196
      %p198 = scmp.ne.s32.totalorder %s187, %s190
      %p199 = scmp.eq.s32.totalorder %s34, 2
      %p200 = por %p198, %p199
      %p201 = scmp.ne.s32.totalorder %s190, %s191
      %p202 = scmp.eq.s32.totalorder %s34, 0
      %p203 = por %p201, %p202
      %p204 = scmp.ne.s32.totalorder %s190, %s191
      %p205 = scmp.eq.s32.totalorder %s35, 2
      %p206 = por %p204, %p205
      %p208 = scmp.ne.s32.totalorder %s191, %s207
      %p209 = scmp.eq.s32.totalorder %s35, 0
      %p210 = por %p208, %p209
      %s212 = sadd.s32 %s211, 1
      %p215 = scmp.eq.s32.totalorder %s29, 2
      %p216 = scmp.ne.s32.totalorder %s211, %s213
      %p217 = scmp.eq.s32.totalorder %s29, 0
      %p218 = por %p216, %p217
      %p219 = scmp.ne.s32.totalorder %s211, %s213
      %p220 = scmp.eq.s32.totalorder %s34, 2
      %p221 = por %p219, %p220
      %p222 = scmp.ne.s32.totalorder %s213, %s214
      %p223 = scmp.eq.s32.totalorder %s34, 0
      %p224 = por %p222, %p223
      %p225 = scmp.ne.s32.totalorder %s213, %s214
      %p226 = scmp.eq.s32.totalorder %s35, 2
      %p227 = por %p225, %p226
      %p229 = scmp.ne.s32.totalorder %s214, %s228
      %p230 = scmp.eq.s32.totalorder %s35, 0
      %p231 = por %p229, %p230
      %s233 = sadd.s32 %s232, 1
      %p236 = scmp.eq.s32.totalorder %s29, 2
      %p237 = scmp.ne.s32.totalorder %s232, %s234
      %p238 = scmp.eq.s32.totalorder %s29, 0
      %p239 = por %p237, %p238
      %p240 = scmp.ne.s32.totalorder %s232, %s234
      %p241 = scmp.eq.s32.totalorder %s34, 2
      %p242 = por %p240, %p241
      %p243 = scmp.ne.s32.totalorder %s234, %s235
      %p244 = scmp.eq.s32.totalorder %s34, 0
      %p245 = por %p243, %p244
      %p246 = scmp.ne.s32.totalorder %s234, %s235
      %p247 = scmp.eq.s32.totalorder %s35, 2
      %p248 = por %p246, %p247
      %p250 = scmp.ne.s32.totalorder %s235, %s249
      %p251 = scmp.eq.s32.totalorder %s35, 0
      %p252 = por %p250, %p251
      %s253 = ssub.s32 %s36, %s48
      %p254 = scmp.eq.s32.totalorder %s253, 0
      %s256 = sadd.s32 %s255, 1
      %s257 = scalar_select %p254, %s255, %s256
      %p260 = pneg %p254
      %p261 = scmp.eq.s32.totalorder %s29, 2
      %p262 = por %p260, %p261
      %p263 = scmp.ne.s32.totalorder %s255, %s258
      %p264 = scmp.eq.s32.totalorder %s29, 0
      %p265 = por %p263, %p264
      %p266 = scmp.ne.s32.totalorder %s255, %s258
      %p267 = scmp.eq.s32.totalorder %s34, 2
      %p268 = por %p266, %p267
      %p269 = scmp.ne.s32.totalorder %s258, %s259
      %p270 = scmp.eq.s32.totalorder %s34, 0
      %p271 = por %p269, %p270
      %p272 = scmp.ne.s32.totalorder %s258, %s259
      %p273 = scmp.eq.s32.totalorder %s35, 2
      %p274 = por %p272, %p273
      %p276 = scmp.ne.s32.totalorder %s259, %s275
      %p277 = scmp.eq.s32.totalorder %s35, 0
      %p278 = por %p276, %p277
      %s280 = sadd.s32 %s279, 1
      %p283 = scmp.eq.s32.totalorder %s29, 2
      %p284 = scmp.ne.s32.totalorder %s279, %s281
      %p285 = scmp.eq.s32.totalorder %s29, 0
      %p286 = por %p284, %p285
      %p287 = scmp.ne.s32.totalorder %s279, %s281
      %p288 = scmp.eq.s32.totalorder %s34, 2
      %p289 = por %p287, %p288
      %p290 = scmp.ne.s32.totalorder %s281, %s282
      %p291 = scmp.eq.s32.totalorder %s34, 0
      %p292 = por %p290, %p291
      %p293 = scmp.ne.s32.totalorder %s281, %s282
      %p294 = scmp.eq.s32.totalorder %s35, 2
      %p295 = por %p293, %p294
      %p297 = scmp.ne.s32.totalorder %s282, %s296
      %p298 = scmp.eq.s32.totalorder %s35, 0
      %p299 = por %p297, %p298
      %s301 = sadd.s32 %s300, 1
      %p304 = scmp.eq.s32.totalorder %s29, 2
      %p305 = scmp.ne.s32.totalorder %s300, %s302
      %p306 = scmp.eq.s32.totalorder %s29, 0
      %p307 = por %p305, %p306
      %p308 = scmp.ne.s32.totalorder %s300, %s302
      %p309 = scmp.eq.s32.totalorder %s34, 2
      %p310 = por %p308, %p309
      %p311 = scmp.ne.s32.totalorder %s302, %s303
      %p312 = scmp.eq.s32.totalorder %s34, 0
      %p313 = por %p311, %p312
      %p314 = scmp.ne.s32.totalorder %s302, %s303
      %p315 = scmp.eq.s32.totalorder %s35, 2
      %p316 = por %p314, %p315
      %p318 = scmp.ne.s32.totalorder %s303, %s317
      %p319 = scmp.eq.s32.totalorder %s35, 0
      %p320 = por %p318, %p319
      %s321 = ssub.s32 %s36, %s48
      %s322 = ssub.s32 %s37, %s44
      %s323 = sor.u32 %s321, %s322
      %p324 = scmp.eq.s32.totalorder %s323, 0
      %s326 = sadd.s32 %s325, 1
      %s327 = scalar_select %p324, %s325, %s326
      %p330 = pneg %p324
      %p331 = scmp.eq.s32.totalorder %s29, 2
      %p332 = por %p330, %p331
      %p333 = scmp.ne.s32.totalorder %s325, %s328
      %p334 = scmp.eq.s32.totalorder %s29, 0
      %p335 = por %p333, %p334
      %p336 = scmp.ne.s32.totalorder %s325, %s328
      %p337 = scmp.eq.s32.totalorder %s34, 2
      %p338 = por %p336, %p337
      %p339 = scmp.ne.s32.totalorder %s328, %s329
      %p340 = scmp.eq.s32.totalorder %s34, 0
      %p341 = por %p339, %p340
      %p342 = scmp.ne.s32.totalorder %s328, %s329
      %p343 = scmp.eq.s32.totalorder %s35, 2
      %p344 = por %p342, %p343
      %p346 = scmp.ne.s32.totalorder %s329, %s345
      %p347 = scmp.eq.s32.totalorder %s35, 0
      %p348 = por %p346, %p347
      %p349 = scmp.le.s32.totalorder 1, %s29
      %p350 = scmp.lt.s32.totalorder %s29, 4
      %p351 = pnand %p349, %p350
      %p352 = pneg %p351
      // Predicated region
      $region9: #{tpu_custom_call.1} parent=5 // pred_check
        _
      $region10: #{tpu_custom_call.1} parent=5 // pred_check_branch
        %354 = sbr.rel (%p351) target = $region12
      $region11: #{tpu_custom_call.1} parent=5 // pred_region
        %s355 = ssub.s32 %s29, 1
        // Predicated region
        $region13: #{tpu_custom_call.1} parent=11 // pred_check
          %p356 = pneg %p123
        $region14: #{tpu_custom_call.1} parent=11 // pred_check_branch
          %358 = sbr.rel (%p356) target = $region16
        $region15: #{tpu_custom_call.1} parent=11 // pred_region
          %p359 = scmp.lt.s32.totalorder %s39, 0
          %s360 = scalar_select %p359, %s39, 0
          %s361 = smul.addr %s360, 2
          %s362 = scalar_lea.vmem %s2, %s361
        $region16: #{tpu_custom_call.1} parent=11 // pred_fallthru
          _
        // Predicated region
        $region17: #{tpu_custom_call.1} parent=11 // pred_check
          %p363 = pneg %p224
        $region18: #{tpu_custom_call.1} parent=11 // pred_check_branch
          %365 = sbr.rel (%p363) target = $region20
        $region19: #{tpu_custom_call.1} parent=11 // pred_region
          _
        $region20: #{tpu_custom_call.1} parent=11 // pred_fallthru
          _
        // Predicated region
        $region21: #{tpu_custom_call.1} parent=11 // pred_check
          %p366 = pneg %p245
        $region22: #{tpu_custom_call.1} parent=11 // pred_check_branch
          %368 = sbr.rel (%p366) target = $region24
        $region23: #{tpu_custom_call.1} parent=11 // pred_region
          _
        $region24: #{tpu_custom_call.1} parent=11 // pred_fallthru
          _
        // Predicated region
        $region25: #{tpu_custom_call.1} parent=11 // pred_check
          %p369 = pneg %p292
        $region26: #{tpu_custom_call.1} parent=11 // pred_check_branch
          %371 = sbr.rel (%p369) target = $region28
        $region27: #{tpu_custom_call.1} parent=11 // pred_region
          _
        $region28: #{tpu_custom_call.1} parent=11 // pred_fallthru
          _
        // Predicated region
        $region29: #{tpu_custom_call.1} parent=11 // pred_check
          %p372 = pneg %p313
        $region30: #{tpu_custom_call.1} parent=11 // pred_check_branch
          %374 = sbr.rel (%p372) target = $region32
        $region31: #{tpu_custom_call.1} parent=11 // pred_region
          _
        $region32: #{tpu_custom_call.1} parent=11 // pred_fallthru
          _
      $region12: #{tpu_custom_call.1} parent=5 // pred_fallthru
        _
      %p375 = scmp.lt.s32.totalorder %s29, 3
      // Predicated region
      $region33: #{tpu_custom_call.1} parent=5 // pred_check
        %p376 = pneg %p375
      $region34: #{tpu_custom_call.1} parent=5 // pred_check_branch
        %378 = sbr.rel (%p376) target = $region36
      $region35: #{tpu_custom_call.1} parent=5 // pred_region
        // Predicated region
        $region37: #{tpu_custom_call.1} parent=35 // pred_check
          %p379 = pneg %p63
        $region38: #{tpu_custom_call.1} parent=35 // pred_check_branch
          %381 = sbr.rel (%p379) target = $region40
        $region39: #{tpu_custom_call.1} parent=35 // pred_region
          %s382 = sand.u32 %s53, 1
          %s383 = scalar_lea.sflag [#allocation3], %s382
          %s384 = sand.u32 %s53, 1
          %s385 = smul.addr %s384, 16
          %s386 = scalar_lea.vmem [#allocation2], %s385
          %s387 = smul.u32 2, %s37
          %s389 = ssub.s32 256, 256
          %390 = vsyncadd %s383, %s389
          %s391 = smul.addr %s36, 2
          %s392 = sadd.s32 %s387, %s391
          %s393 = smul.addr %s392, 128
          %s394 = scalar_lea.hbm %s0, %s393
          %s395 = sshll.u32 %s386, 4
          %s396 = int_to_ptr.vmem [resolvable:$true] %s395
          %401 = dma.hbm_to_vmem [thread:$0]  %s394, 256, %s396, %s383, 128, 128, 8
        $region40: #{tpu_custom_call.1} parent=35 // pred_fallthru
          _
        // Predicated region
        $region41: #{tpu_custom_call.1} parent=35 // pred_check
          %p402 = pneg %p91
        $region42: #{tpu_custom_call.1} parent=35 // pred_check_branch
          %404 = sbr.rel (%p402) target = $region44
        $region43: #{tpu_custom_call.1} parent=35 // pred_region
          %s405 = sand.u32 %s29, 1
          %s406 = scalar_lea.sflag [#allocation6], %s405
          %s407 = sand.u32 %s81, 1
          %s408 = smul.addr %s407, 16
          %s409 = scalar_lea.vmem [#allocation5], %s408
          %s410 = smul.u32 2, %s37
          %s412 = ssub.s32 256, 256
          %413 = vsyncadd %s406, %s412
          %s414 = smul.addr %s36, 2
          %s415 = sadd.s32 %s410, %s414
          %s416 = smul.addr %s415, 128
          %s417 = scalar_lea.hbm %s1, %s416
          %s418 = sshll.u32 %s409, 4
          %s419 = int_to_ptr.vmem [resolvable:$true] %s418
          %424 = dma.hbm_to_vmem [thread:$0]  %s417, 256, %s419, %s406, 128, 128, 8
        $region44: #{tpu_custom_call.1} parent=35 // pred_fallthru
          _
        // Predicated region
        $region45: #{tpu_custom_call.1} parent=35 // pred_check
          %p425 = pneg %p145
        $region46: #{tpu_custom_call.1} parent=35 // pred_check_branch
          %427 = sbr.rel (%p425) target = $region48
        $region47: #{tpu_custom_call.1} parent=35 // pred_region
          %s428 = sand.u32 %s29, 1
          %s429 = scalar_lea.sflag [#allocation6], %s428
          %s430 = sand.u32 %s135, 1
          %s431 = smul.addr %s430, 32
          %s432 = scalar_lea.vmem [#allocation7], %s431
          %s433 = smul.u32 2, %s37
          %s435 = ssub.s32 512, 512
          %436 = vsyncadd %s429, %s435
          %s437 = smul.addr %s433, 2
          %s438 = smul.addr %s36, 4
          %s439 = sadd.s32 %s437, %s438
          %s440 = smul.addr %s439, 128
          %s441 = scalar_lea.hbm %s3, %s440
          %s442 = sshll.u32 %s432, 4
          %s443 = int_to_ptr.vmem [resolvable:$true] %s442
          %448 = dma.hbm_to_vmem [thread:$0]  %s441, 512, %s443, %s429, 128, 128, 8
        $region48: #{tpu_custom_call.1} parent=35 // pred_fallthru
          _
        // Predicated region
        $region49: #{tpu_custom_call.1} parent=35 // pred_check
          %p449 = pneg %p171
        $region50: #{tpu_custom_call.1} parent=35 // pred_check_branch
          %451 = sbr.rel (%p449) target = $region52
        $region51: #{tpu_custom_call.1} parent=35 // pred_region
          %s452 = sand.u32 %s161, 1
          %s453 = scalar_lea.sflag [#allocation9], %s452
          %s454 = sand.u32 %s161, 1
          %s455 = smul.addr %s454, 32
          %s456 = scalar_lea.vmem [#allocation8], %s455
          %s458 = ssub.s32 512, 512
          %459 = vsyncadd %s453, %s458
          %s460 = smul.addr %s36, 4
          %s461 = smul.addr %s460, 128
          %s462 = scalar_lea.hbm %s4, %s461
          %s463 = sshll.u32 %s456, 4
          %s464 = int_to_ptr.vmem [resolvable:$true] %s463
          %469 = dma.hbm_to_vmem [thread:$0]  %s462, 512, %s464, %s453, 128, 128, 8
        $region52: #{tpu_custom_call.1} parent=35 // pred_fallthru
          _
        // Predicated region
        $region53: #{tpu_custom_call.1} parent=35 // pred_check
          %p470 = pneg %p197
        $region54: #{tpu_custom_call.1} parent=35 // pred_check_branch
          %472 = sbr.rel (%p470) target = $region56
        $region55: #{tpu_custom_call.1} parent=35 // pred_region
          %p473 = scmp.lt.s32.totalorder %s36, 2
          %s474 = scalar_select %p473, %s36, 2
          %s475 = scalar_lea.vmem %s5, %s474
        $region56: #{tpu_custom_call.1} parent=35 // pred_fallthru
          _
        // Predicated region
        $region57: #{tpu_custom_call.1} parent=35 // pred_check
          %p476 = pneg %p265
        $region58: #{tpu_custom_call.1} parent=35 // pred_check_branch
          %478 = sbr.rel (%p476) target = $region60
        $region59: #{tpu_custom_call.1} parent=35 // pred_region
          %p479 = scmp.lt.s32.totalorder %s36, 2
          %s480 = scalar_select %p479, %s36, 2
          %s481 = scalar_lea.vmem %s8, %s480
        $region60: #{tpu_custom_call.1} parent=35 // pred_fallthru
          _
      $region36: #{tpu_custom_call.1} parent=5 // pred_fallthru
        _
      %p482 = scmp.le.s32.totalorder 1, %s29
      %p483 = scmp.lt.s32.totalorder %s29, 4
      %p484 = pnand %p482, %p483
      %p485 = pneg %p484
      // Predicated region
      $region61: #{tpu_custom_call.1} parent=5 // pred_check
        _
      $region62: #{tpu_custom_call.1} parent=5 // pred_check_branch
        %487 = sbr.rel (%p484) target = $region64
      $region63: #{tpu_custom_call.1} parent=5 // pred_region
        %s488 = ssub.s32 %s29, 1
        %s489 = sand.u32 %s56, 1
        %s490 = scalar_lea.sflag [#allocation3], %s489
        %s491 = sand.u32 %s56, 1
        %s492 = smul.addr %s491, 16
        %s493 = scalar_lea.vmem [#allocation2], %s492
        // Predicated region
        $region65: #{tpu_custom_call.1} parent=63 // pred_check
          %p494 = pneg %p69
        $region66: #{tpu_custom_call.1} parent=63 // pred_check_branch
          %496 = sbr.rel (%p494) target = $region68
        $region67: #{tpu_custom_call.1} parent=63 // pred_region
          %497 = dma.done %s490, 256
        $region68: #{tpu_custom_call.1} parent=63 // pred_fallthru
          _
        %s498 = sand.u32 %s34, 1
        %s499 = scalar_lea.sflag [#allocation6], %s498
        %s500 = sand.u32 %s84, 1
        %s501 = smul.addr %s500, 16
        %s502 = scalar_lea.vmem [#allocation5], %s501
        // Predicated region
        $region69: #{tpu_custom_call.1} parent=63 // pred_check
          %p503 = pneg %p97
        $region70: #{tpu_custom_call.1} parent=63 // pred_check_branch
          %505 = sbr.rel (%p503) target = $region72
        $region71: #{tpu_custom_call.1} parent=63 // pred_region
          %506 = dma.done %s499, 256
        $region72: #{tpu_custom_call.1} parent=63 // pred_fallthru
          _
        %s507 = sand.u32 %s34, 1
        %s508 = scalar_lea.sflag [#allocation6], %s507
        %s509 = sand.u32 %s138, 1
        %s510 = smul.addr %s509, 32
        %s511 = scalar_lea.vmem [#allocation7], %s510
        // Predicated region
        $region73: #{tpu_custom_call.1} parent=63 // pred_check
          %p512 = pneg %p151
        $region74: #{tpu_custom_call.1} parent=63 // pred_check_branch
          %514 = sbr.rel (%p512) target = $region76
        $region75: #{tpu_custom_call.1} parent=63 // pred_region
          %515 = dma.done %s508, 512
        $region76: #{tpu_custom_call.1} parent=63 // pred_fallthru
          _
        %s516 = sand.u32 %s164, 1
        %s517 = scalar_lea.sflag [#allocation9], %s516
        %s518 = sand.u32 %s164, 1
        %s519 = smul.addr %s518, 32
        %s520 = scalar_lea.vmem [#allocation8], %s519
        // Predicated region
        $region77: #{tpu_custom_call.1} parent=63 // pred_check
          %p521 = pneg %p177
        $region78: #{tpu_custom_call.1} parent=63 // pred_check_branch
          %523 = sbr.rel (%p521) target = $region80
        $region79: #{tpu_custom_call.1} parent=63 // pred_region
          %524 = dma.done %s517, 512
        $region80: #{tpu_custom_call.1} parent=63 // pred_fallthru
          _
        %s525 = sand.u32 %s56, 1
        %s526 = scalar_lea.sflag [#allocation3], %s525
        %s527 = sand.u32 %s56, 1
        %s528 = smul.addr %s527, 16
        %s529 = scalar_lea.vmem [#allocation2], %s528
        %p530 = pneg %p69
        %p531 = pneg %p66
        %s532 = sand.u32 %s34, 1
        %s533 = scalar_lea.sflag [#allocation6], %s532
        %s534 = sand.u32 %s84, 1
        %s535 = smul.addr %s534, 16
        %s536 = scalar_lea.vmem [#allocation5], %s535
        %p537 = pneg %p97
        %p538 = pneg %p94
        %p539 = scmp.lt.s32.totalorder %s39, 0
        %s540 = scalar_select %p539, %s39, 0
        %s541 = smul.addr %s540, 2
        %s542 = scalar_lea.vmem %s2, %s541
        %p543 = pneg %p123
        %p544 = pneg %p120
        %s545 = sand.u32 %s34, 1
        %s546 = scalar_lea.sflag [#allocation6], %s545
        %s547 = sand.u32 %s138, 1
        %s548 = smul.addr %s547, 32
        %s549 = scalar_lea.vmem [#allocation7], %s548
        %p550 = pneg %p151
        %p551 = pneg %p148
        %s552 = sand.u32 %s164, 1
        %s553 = scalar_lea.sflag [#allocation9], %s552
        %s554 = sand.u32 %s164, 1
        %s555 = smul.addr %s554, 32
        %s556 = scalar_lea.vmem [#allocation8], %s555
        %p557 = pneg %p177
        %p558 = pneg %p174
        %p559 = scmp.lt.s32.totalorder %s38, 2
        %s560 = scalar_select %p559, %s38, 2
        %s561 = scalar_lea.vmem %s5, %s560
        %p562 = pneg %p203
        %p563 = pneg %p200
        %p564 = pneg %p224
        %p565 = pneg %p221
        %p566 = pneg %p245
        %p567 = pneg %p242
        %p568 = scmp.lt.s32.totalorder %s38, 2
        %s569 = scalar_select %p568, %s38, 2
        %s570 = scalar_lea.vmem %s8, %s569
        %p571 = pneg %p271
        %p572 = pneg %p268
        %p573 = pneg %p292
        %p574 = pneg %p289
        %p575 = pneg %p313
        %p576 = pneg %p310
        %p577 = pneg %p341
        %p578 = pneg %p338
        %s579 = sand.u32 %s328, 1
        %s580 = scalar_lea.sflag [#allocation4], %s579
        %s581 = sand.u32 %s328, 1
        %s582 = smul.addr %s581, 2
        %s583 = scalar_lea.vmem [#allocation10], %s582
        %s584 = smul.u32 2, %s39
        %s585 = smul.u32 2, %s39
        %p586 = scmp.lt.s32.totalorder %s39, 0
        %s587 = scalar_select %p586, %s39, 0
        %s588 = smul.addr %s587, 2
        %s589 = scalar_lea.vmem %s2, %s588
        %s590 = smul.u32 2, %s39
        %p591 = scmp.lt.s32.totalorder %s38, 2
        %s592 = scalar_select %p591, %s38, 2
        %s593 = scalar_lea.vmem %s5, %s592
        %p594 = scmp.lt.s32.totalorder %s38, 2
        %s595 = scalar_select %p594, %s38, 2
        %s596 = scalar_lea.vmem %s8, %s595
        %v597 = vld [vmem:[%s493] sm:$0xff]
        %v598 = vld [vmem:[%s493 + $0x8] sm:$0xff]
        %v599 = vld [vmem:[%s502] sm:$0xff]
        %v600 = vld [vmem:[%s502 + $0x8] sm:$0xff]
        %v601 = vld [vmem:[%s589] sm:$0x3]
        %v602 = vld [vmem:[%s511] sm:$0xff]
        %v603 = vld [vmem:[%s511 + $0x8] sm:$0xff]
        %v604 = vld [vmem:[%s511 + $0x10] sm:$0xff]
        %v605 = vld [vmem:[%s511 + $0x18] sm:$0xff]
        %v606 = vld [vmem:[%s6] sm:$0xff]
        %v607 = vld [vmem:[%s6 + $0x8] sm:$0xff]
        %v608 = vld [vmem:[%s6 + $0x10] sm:$0xff]
        %v609 = vld [vmem:[%s6 + $0x18] sm:$0xff]
        %v610 = vld [vmem:[%s7] sm:$0x1]
        %v612 = vlaneseq
        %v613 = vshrl.u32 %v612, 7
        %v614 = vsub.s32 0, %v613
        %v615 = vrot.slane %v610, %v614
        %vm617 = vcmask 261120
        %v619 = vsel %vm617, %v601, 0
        %621 = vmatprep.subr.mxu0 0.0
        %622 = vmatpush1.msra.mxu0 %v606
        %623 = vmatprep.subr.mxu0 0.0
        %624 = vmatpush1.msra.mxu0 %v607
        %625 = vmatprep.subr.mxu0 0.0
        %626 = vmatpush1.msra.mxu0 %v608
        %627 = vmatprep.subr.mxu0 0.0
        %628 = vmatpush1.msra.mxu0 %v609
        %629 = vmatprep.subr.mxu0 0.0
        %630 = vmatpush1.msra.mxu0 0.0
        %631 = vmatprep.subr.mxu0 0.0
        %632 = vmatpush1.msra.mxu0 0.0
        %633 = vmatprep.subr.mxu0 0.0
        %634 = vmatpush1.msra.mxu0 0.0
        %635 = vmatprep.subr.mxu0 0.0
        %636 = vmatpush1.msra.mxu0 0.0
        %637 = vmatprep.subr.mxu0 0.0
        %638 = vmatpush1.msra.mxu0 0.0
        %639 = vmatprep.subr.mxu0 0.0
        %640 = vmatpush1.msra.mxu0 0.0
        %641 = vmatprep.subr.mxu0 0.0
        %642 = vmatpush1.msra.mxu0 0.0
        %643 = vmatprep.subr.mxu0 0.0
        %644 = vmatpush1.msra.mxu0 0.0
        %645 = vmatprep.subr.mxu0 0.0
        %646 = vmatpush1.msra.mxu0 0.0
        %647 = vmatprep.subr.mxu0 0.0
        %648 = vmatpush1.msra.mxu0 0.0
        %649 = vmatprep.subr.mxu0 0.0
        %650 = vmatpush1.msra.mxu0 0.0
        %651 = vmatprep.subr.mxu0 0.0
        %652 = vmatpush1.msra.mxu0 0.0
        %653 = vmatprep.subr.mxu0 0.0
        %654 = vmatpush1.msra.mxu0 0.0
        %655 = vmatprep.subr.mxu0 0.0
        %656 = vmatpush1.msra.mxu0 0.0
        %657 = vmatprep.subr.mxu0 0.0
        %658 = vmatpush1.msra.mxu0 0.0
        %659 = vmatprep.subr.mxu0 0.0
        %660 = vmatpush1.msra.mxu0 0.0
        %661 = vmatprep.subr.mxu0 0.0
        %662 = vmatpush1.msra.mxu0 0.0
        %663 = vmatprep.subr.mxu0 0.0
        %664 = vmatpush1.msra.mxu0 0.0
        %665 = vmatprep.subr.mxu0 0.0
        %666 = vmatpush1.msra.mxu0 0.0
        %667 = vmatprep.subr.mxu0 0.0
        %668 = vmatpush1.msra.mxu0 0.0
        %669 = vmatprep.subr.mxu0 0.0
        %670 = vmatpush1.msra.mxu0 0.0
        %671 = vmatprep.subr.mxu0 0.0
        %672 = vmatpush1.msra.mxu0 0.0
        %673 = vmatprep.subr.mxu0 0.0
        %674 = vmatpush1.msra.mxu0 0.0
        %675 = vmatprep.subr.mxu0 0.0
        %676 = vmatpush1.msra.mxu0 0.0
        %677 = vmatprep.subr.mxu0 0.0
        %678 = vmatpush1.msra.mxu0 0.0
        %679 = vmatprep.subr.mxu0 0.0
        %680 = vmatpush1.msra.mxu0 0.0
        %681 = vmatprep.subr.mxu0 0.0
        %682 = vmatpush1.msra.mxu0 0.0
        %683 = vmatprep.subr.mxu0 0.0
        %684 = vmatpush1.msra.mxu0 0.0
        %685 = vmatprep.mubr.f32.mxu0 0.0
        %686 = vmatmul.mubr.f32.gmra.mrb[0].mxu0 %v619
        %v687 = vpop.f32.mrb[0].mxu0
        %v688 = vadd.f32 %v615, %v687
        %v689 = vpop.f32.mrb[0].mxu0
        %690 = vdwg.mxu0
        %v691 = vld [vmem:[%s520] sm:$0xff]
        %v692 = vld [vmem:[%s520 + $0x8] sm:$0xff]
        %v693 = vld [vmem:[%s520 + $0x10] sm:$0xff]
        %v694 = vld [vmem:[%s520 + $0x18] sm:$0xff]
        %v695 = vld [vmem:[%s593] sm:$0x1]
        %v697 = vlaneseq
        %v698 = vshrl.u32 %v697, 7
        %v699 = vsub.s32 0, %v698
        %v700 = vrot.slane %v695, %v699
        %v703 = vsel %vm617, %v597, 0
        %v706 = vsel %vm617, %v598, 0
        %708 = vmatprep.subr.mxu0 0.0
        %709 = vmatpush1.msra.mxu0 %v691
        %710 = vmatprep.subr.mxu0 0.0
        %711 = vmatpush1.msra.mxu0 %v692
        %712 = vmatprep.subr.mxu0 0.0
        %713 = vmatpush1.msra.mxu0 %v693
        %714 = vmatprep.subr.mxu0 0.0
        %715 = vmatpush1.msra.mxu0 %v694
        %716 = vmatprep.subr.mxu0 0.0
        %717 = vmatpush1.msra.mxu0 0.0
        %718 = vmatprep.subr.mxu0 0.0
        %719 = vmatpush1.msra.mxu0 0.0
        %720 = vmatprep.subr.mxu0 0.0
        %721 = vmatpush1.msra.mxu0 0.0
        %722 = vmatprep.subr.mxu0 0.0
        %723 = vmatpush1.msra.mxu0 0.0
        %724 = vmatprep.subr.mxu0 0.0
        %725 = vmatpush1.msra.mxu0 0.0
        %726 = vmatprep.subr.mxu0 0.0
        %727 = vmatpush1.msra.mxu0 0.0
        %728 = vmatprep.subr.mxu0 0.0
        %729 = vmatpush1.msra.mxu0 0.0
        %730 = vmatprep.subr.mxu0 0.0
        %731 = vmatpush1.msra.mxu0 0.0
        %732 = vmatprep.subr.mxu0 0.0
        %733 = vmatpush1.msra.mxu0 0.0
        %734 = vmatprep.subr.mxu0 0.0
        %735 = vmatpush1.msra.mxu0 0.0
        %736 = vmatprep.subr.mxu0 0.0
        %737 = vmatpush1.msra.mxu0 0.0
        %738 = vmatprep.subr.mxu0 0.0
        %739 = vmatpush1.msra.mxu0 0.0
        %740 = vmatprep.subr.mxu0 0.0
        %741 = vmatpush1.msra.mxu0 0.0
        %742 = vmatprep.subr.mxu0 0.0
        %743 = vmatpush1.msra.mxu0 0.0
        %744 = vmatprep.subr.mxu0 0.0
        %745 = vmatpush1.msra.mxu0 0.0
        %746 = vmatprep.subr.mxu0 0.0
        %747 = vmatpush1.msra.mxu0 0.0
        %748 = vmatprep.subr.mxu0 0.0
        %749 = vmatpush1.msra.mxu0 0.0
        %750 = vmatprep.subr.mxu0 0.0
        %751 = vmatpush1.msra.mxu0 0.0
        %752 = vmatprep.subr.mxu0 0.0
        %753 = vmatpush1.msra.mxu0 0.0
        %754 = vmatprep.subr.mxu0 0.0
        %755 = vmatpush1.msra.mxu0 0.0
        %756 = vmatprep.subr.mxu0 0.0
        %757 = vmatpush1.msra.mxu0 0.0
        %758 = vmatprep.subr.mxu0 0.0
        %759 = vmatpush1.msra.mxu0 0.0
        %760 = vmatprep.subr.mxu0 0.0
        %761 = vmatpush1.msra.mxu0 0.0
        %762 = vmatprep.subr.mxu0 0.0
        %763 = vmatpush1.msra.mxu0 0.0
        %764 = vmatprep.subr.mxu0 0.0
        %765 = vmatpush1.msra.mxu0 0.0
        %766 = vmatprep.subr.mxu0 0.0
        %767 = vmatpush1.msra.mxu0 0.0
        %768 = vmatprep.subr.mxu0 0.0
        %769 = vmatpush1.msra.mxu0 0.0
        %770 = vmatprep.subr.mxu0 0.0
        %771 = vmatpush1.msra.mxu0 0.0
        %772 = vmatprep.mubr.f32.mxu0 0.0
        %773 = vmatmul.mubr.f32.gmra.mrb[0].mxu0 %v703
        %v774 = vpop.f32.mrb[0].mxu0
        %v775 = vadd.f32 %v700, %v774
        %v776 = vpop.f32.mrb[0].mxu0
        %777 = vmatprep.mubr.f32.mxu0 0.0
        %778 = vmatmul.mubr.f32.gmra.mrb[0].mxu0 %v706
        %v779 = vpop.f32.mrb[0].mxu0
        %v780 = vadd.f32 %v700, %v779
        %v781 = vpop.f32.mrb[0].mxu0
        %782 = vdwg.mxu0
        %v785 = vunpack.c.l.s4 1966171168
        %v786 = vunpack.c.0.s8 %v785
        %v787 = vlaneseq
        %v788 = vshrl.u32 %v787, 7
        %v789 = vsub.s32 %v786, %v788
        %v790 = vrot.slane %v688, %v789
        %v791 = vcombine.high %v790, %v790
        %v793 = vunpack.c.l.s4 1966171168
        %v794 = vunpack.c.0.s8 %v793
        %v795 = vlaneseq
        %v796 = vshrl.u32 %v795, 7
        %v797 = vsub.s32 %v794, %v796
        %v798 = vrot.slane %v790, %v797
        %v800 = vunpack.c.l.s4 1966171168
        %v801 = vunpack.c.0.s8 %v800
        %v802 = vlaneseq
        %v803 = vshrl.u32 %v802, 7
        %v804 = vsub.s32 %v801, %v803
        %v805 = vrot.slane %v791, %v804
        %v806 = vlaneseq
        %v807 = vshrl.u32 %v806, 7
        %v808 = vsub.s32 0, %v807
        %v809 = vrot.slane %v798, %v808
        %v810 = vlaneseq
        %v811 = vshrl.u32 %v810, 7
        %v812 = vsub.s32 0, %v811
        %v813 = vrot.slane %v805, %v812
        %v816 = vadd.f32 %v775, %v809
        %v817 = vadd.f32 %v780, %v813
        %v818 = vxor.u32 %v816, 2147483648
        %v819 = vxor.u32 %v817, 2147483648
        %v820 = vmul.f32 %v818, 1.442695
        %v821 = vpow.pop %v820
        %v822 = vmul.f32 %v819, 1.442695
        %v823 = vpow.pop %v822
        %v824 = vadd.f32 %v821, 1.0
        %v825 = vadd.f32 %v823, 1.0
        %v826 = vrcp.pop %v824
        %v827 = vmul.f32 1.0, %v826
        %v828 = vrcp.pop %v825
        %v829 = vmul.f32 1.0, %v828
        %v830 = vmul.f32 %v597, %v827
        %v831 = vmul.f32 %v598, %v829
        %v832 = vld [vmem:[%s596] sm:$0x1]
        %v834 = vlaneseq
        %v835 = vshrl.u32 %v834, 7
        %v836 = vsub.s32 0, %v835
        %v837 = vrot.slane %v832, %v836
        %v839 = vmul.f32 %v830, %v837
        %v840 = vmul.f32 %v831, %v837
        %v841 = vsel %vm617, %v839, 0.0
        %842 = vadd.xlane.f32.xlu0 %v841
        %v843 = vpop.xlane.xlu0 %842
        %v844 = vsel %vm617, %v840, 0.0
        %845 = vadd.xlane.f32.xlu0 %v844
        %v846 = vpop.xlane.xlu0 %845
        %v847 = vld [vmem:[%s10] sm:$0x1]
        %v849 = vlaneseq
        %v850 = vshrl.u32 %v849, 7
        %v851 = vsub.s32 0, %v850
        %v852 = vrot.slane %v847, %v851
        %v854 = vmul.f32 %v599, %v852
        %v855 = vmul.f32 %v600, %v852
        %v856 = vsel %vm617, %v854, 0.0
        %857 = vadd.xlane.f32.xlu0 %v856
        %v858 = vpop.xlane.xlu0 %857
        %v859 = vsel %vm617, %v855, 0.0
        %860 = vadd.xlane.f32.xlu0 %v859
        %v861 = vpop.xlane.xlu0 %860
        %v862 = vld [vmem:[%s9] sm:$0xff]
        %v863 = vld [vmem:[%s9 + $0x8] sm:$0xff]
        %v864 = vld [vmem:[%s9 + $0x10] sm:$0xff]
        %v865 = vld [vmem:[%s9 + $0x18] sm:$0xff]
        %866 = vmatprep.subr.mxu0 0.0
        %867 = vmatpush1.msra.mxu0 %v862
        %868 = vmatprep.subr.mxu0 0.0
        %869 = vmatpush1.msra.mxu0 %v863
        %870 = vmatprep.subr.mxu0 0.0
        %871 = vmatpush1.msra.mxu0 %v864
        %872 = vmatprep.subr.mxu0 0.0
        %873 = vmatpush1.msra.mxu0 %v865
        %874 = vmatprep.subr.mxu0 0.0
        %875 = vmatpush1.msra.mxu0 0.0
        %876 = vmatprep.subr.mxu0 0.0
        %877 = vmatpush1.msra.mxu0 0.0
        %878 = vmatprep.subr.mxu0 0.0
        %879 = vmatpush1.msra.mxu0 0.0
        %880 = vmatprep.subr.mxu0 0.0
        %881 = vmatpush1.msra.mxu0 0.0
        %882 = vmatprep.subr.mxu0 0.0
        %883 = vmatpush1.msra.mxu0 0.0
        %884 = vmatprep.subr.mxu0 0.0
        %885 = vmatpush1.msra.mxu0 0.0
        %886 = vmatprep.subr.mxu0 0.0
        %887 = vmatpush1.msra.mxu0 0.0
        %888 = vmatprep.subr.mxu0 0.0
        %889 = vmatpush1.msra.mxu0 0.0
        %890 = vmatprep.subr.mxu0 0.0
        %891 = vmatpush1.msra.mxu0 0.0
        %892 = vmatprep.subr.mxu0 0.0
        %893 = vmatpush1.msra.mxu0 0.0
        %894 = vmatprep.subr.mxu0 0.0
        %895 = vmatpush1.msra.mxu0 0.0
        %896 = vmatprep.subr.mxu0 0.0
        %897 = vmatpush1.msra.mxu0 0.0
        %898 = vmatprep.subr.mxu0 0.0
        %899 = vmatpush1.msra.mxu0 0.0
        %900 = vmatprep.subr.mxu0 0.0
        %901 = vmatpush1.msra.mxu0 0.0
        %902 = vmatprep.subr.mxu0 0.0
        %903 = vmatpush1.msra.mxu0 0.0
        %904 = vmatprep.subr.mxu0 0.0
        %905 = vmatpush1.msra.mxu0 0.0
        %906 = vmatprep.subr.mxu0 0.0
        %907 = vmatpush1.msra.mxu0 0.0
        %908 = vmatprep.subr.mxu0 0.0
        %909 = vmatpush1.msra.mxu0 0.0
        %910 = vmatprep.subr.mxu0 0.0
        %911 = vmatpush1.msra.mxu0 0.0
        %912 = vmatprep.subr.mxu0 0.0
        %913 = vmatpush1.msra.mxu0 0.0
        %914 = vmatprep.subr.mxu0 0.0
        %915 = vmatpush1.msra.mxu0 0.0
        %916 = vmatprep.subr.mxu0 0.0
        %917 = vmatpush1.msra.mxu0 0.0
        %918 = vmatprep.subr.mxu0 0.0
        %919 = vmatpush1.msra.mxu0 0.0
        %920 = vmatprep.subr.mxu0 0.0
        %921 = vmatpush1.msra.mxu0 0.0
        %922 = vmatprep.subr.mxu0 0.0
        %923 = vmatpush1.msra.mxu0 0.0
        %924 = vmatprep.subr.mxu0 0.0
        %925 = vmatpush1.msra.mxu0 0.0
        %926 = vmatprep.subr.mxu0 0.0
        %927 = vmatpush1.msra.mxu0 0.0
        %928 = vmatprep.subr.mxu0 0.0
        %929 = vmatpush1.msra.mxu0 0.0
        %930 = vmatprep.mubr.f32.mxu0 0.0
        %931 = vmatmul.mubr.f32.gmra.mrb[0].mxu0 %v619
        %v932 = vpop.f32.mrb[0].mxu0
        %v933 = vadd.f32 0.0, %v932
        %v934 = vpop.f32.mrb[0].mxu0
        %935 = vdwg.mxu0
        %v937 = vlaneseq
        %v938 = vshrl.u32 %v937, 7
        %v939 = vsub.s32 0, %v938
        %v940 = vrot.slane %v933, %v939
        %942 = vbcast.lane.b32.xlu0 %v940, 256
        %v943 = vpop.permute.xlu0 %942
        %v944 = vlaneseq
        %v945 = vshrl.u32 %v944, 7
        %v946 = vsub.s32 1, %v945
        %v947 = vrot.slane %v933, %v946
        %949 = vbcast.lane.b32.xlu0 %v947, 256
        %v950 = vpop.permute.xlu0 %949
        %v953 = vadd.f32 %v843, %v943
        %v954 = vadd.f32 %v846, %v950
        %v955 = vadd.f32 %v953, %v858
        %v956 = vadd.f32 %v954, %v861
        %v957 = vxor.u32 %v955, 2147483648
        %v958 = vxor.u32 %v956, 2147483648
        %v959 = vmul.f32 %v957, 1.442695
        %v960 = vpow.pop %v959
        %v961 = vmul.f32 %v958, 1.442695
        %v962 = vpow.pop %v961
        %v963 = vadd.f32 %v960, 1.0
        %v964 = vadd.f32 %v962, 1.0
        %v965 = vrcp.pop %v963
        %v966 = vmul.f32 1.0, %v965
        %v967 = vrcp.pop %v964
        %v968 = vmul.f32 1.0, %v967
        %971 = vset.pattern.permute.xlu0 0
        %972 = vperm.xlu0 %971, %v966
        %v973 = vpop.permute.xlu0 %972
        %974 = vset.pattern.permute.xlu0 0
        %975 = vperm.xlu0 %974, %v968
        %v976 = vpop.permute.xlu0 %975
        %v977 = vlaneseq
        %v978 = vand.u32 %v977, 127
        %v979 = vlaneseq
        %v980 = vshrl.u32 %v979, 7
        %v981 = vsub.s32 %v978, %v980
        %v982 = vrot.slane %v973, %v981
        %v983 = vlaneseq
        %v984 = vshrl.u32 %v983, 7
        %v985 = vsub.s32 %v978, %v984
        %v986 = vrot.slane %v976, %v985
        %vm987 = vcmask 1041409
        %v988 = vsel %vm987, %v986, %v982
        %vm990 = vcmask 58368
        %v991 = vsel %vm990, %v988, 0.0
        %992 = vadd.xlane.f32.xlu0 %v991
        %v993 = vpop.xlane.xlu0 %992
        %v996 = vmul.f32 %v830, %v973
        %v997 = vmul.f32 %v831, %v976
        %v998 = vsel %vm617, %v996, 0.0
        %v999 = vrot.slane %v998, 4
        %v1000 = vadd.f32 %v998, %v999
        %v1001 = vrot.slane %v1000, 2
        %v1002 = vadd.f32 %v1000, %v1001
        %v1003 = vrot.slane %v1002, 1
        %v1004 = vadd.f32 %v1002, %v1003
        %v1005 = vsel %vm617, %v997, 0.0
        %v1006 = vrot.slane %v1005, 4
        %v1007 = vadd.f32 %v1005, %v1006
        %v1008 = vrot.slane %v1007, 2
        %v1009 = vadd.f32 %v1007, %v1008
        %v1010 = vrot.slane %v1009, 1
        %v1011 = vadd.f32 %v1009, %v1010
        %v1013 = vrot.slane %v993, 1
        %v1016 = vrcp.pop %v993
        %v1017 = vmul.f32 %v1004, %v1016
        %v1018 = vrcp.pop %v1013
        %v1019 = vmul.f32 %v1011, %v1018
        %v1020 = vsel %vm617, %v597, 0.0
        %v1021 = vrot.slane %v1020, 4
        %v1022 = vadd.f32 %v1020, %v1021
        %v1023 = vrot.slane %v1022, 2
        %v1024 = vadd.f32 %v1022, %v1023
        %v1025 = vrot.slane %v1024, 1
        %v1026 = vadd.f32 %v1024, %v1025
        %v1027 = vsel %vm617, %v598, 0.0
        %v1028 = vrot.slane %v1027, 4
        %v1029 = vadd.f32 %v1027, %v1028
        %v1030 = vrot.slane %v1029, 2
        %v1031 = vadd.f32 %v1029, %v1030
        %v1032 = vrot.slane %v1031, 1
        %v1033 = vadd.f32 %v1031, %v1032
        %v1034 = vrcp.pop 8.0
        %v1035 = vmul.f32 %v1026, %v1034
        %v1036 = vmul.f32 %v1033, %v1034
        %v1037 = vadd.f32 %v1017, %v1035
        %v1038 = vadd.f32 %v1019, %v1036
        %v1039 = vlaneseq
        %v1040 = vshrl.u32 %v1039, 7
        %v1041 = vsub.s32 0, %v1040
        %v1042 = vrot.slane %v1037, %v1041
        %v1043 = vlaneseq
        %v1044 = vshrl.u32 %v1043, 7
        %v1045 = vsub.s32 0, %v1044
        %v1046 = vrot.slane %v1038, %v1045
        %v1047 = vmul.f32 %v1042, %v602
        %v1048 = vmul.f32 %v1042, %v603
        %v1049 = vmul.f32 %v1046, %v604
        %v1050 = vmul.f32 %v1046, %v605
        %v1051 = vsel %vm617, %v1047, 0.0
        %1052 = vadd.xlane.f32.xlu0 %v1051
        %v1053 = vpop.xlane.xlu0 %1052
        %v1054 = vsel %vm617, %v1048, 0.0
        %1055 = vadd.xlane.f32.xlu0 %v1054
        %v1056 = vpop.xlane.xlu0 %1055
        %v1057 = vsel %vm617, %v1049, 0.0
        %1058 = vadd.xlane.f32.xlu0 %v1057
        %v1059 = vpop.xlane.xlu0 %1058
        %v1060 = vsel %vm617, %v1050, 0.0
        %1061 = vadd.xlane.f32.xlu0 %v1060
        %v1062 = vpop.xlane.xlu0 %1061
        %v1067 = vlaneseq
        %v1068 = vshrl.u32 %v1067, 7
        %v1069 = vsub.s32 %v978, %v1068
        %v1070 = vrot.slane %v1053, %v1069
        %v1071 = vadd.s32 %v978, 4294967288
        %v1072 = vlaneseq
        %v1073 = vshrl.u32 %v1072, 7
        %v1074 = vsub.s32 %v1071, %v1073
        %v1075 = vrot.slane %v1056, %v1074
        %vm1076 = vcmask 130112
        %v1077 = vsel %vm1076, %v1075, %v1070
        %v1078 = vlaneseq
        %v1079 = vshrl.u32 %v1078, 7
        %v1080 = vsub.s32 %v978, %v1079
        %v1081 = vrot.slane %v1059, %v1080
        %v1082 = vlaneseq
        %v1083 = vshrl.u32 %v1082, 7
        %v1084 = vsub.s32 %v1071, %v1083
        %v1085 = vrot.slane %v1062, %v1084
        %v1086 = vsel %vm1076, %v1085, %v1081
        %v1087 = vsel %vm987, %v1086, %v1077
        %vm1089 = vcmask 123904
        %1090 = vst.msk [vmem:[%s583] sm:$0x3] %vm1089, %v1087
        %s1091 = sand.u32 %s328, 1
        %s1092 = scalar_lea.sflag [#allocation4], %s1091
        %s1093 = sand.u32 %s328, 1
        %s1094 = smul.addr %s1093, 2
        %s1095 = scalar_lea.vmem [#allocation10], %s1094
        // Predicated region
        $region81: #{tpu_custom_call.1} parent=63 // pred_check
          %p1096 = pneg %p338
        $region82: #{tpu_custom_call.1} parent=63 // pred_check_branch
          %1098 = sbr.rel (%p1096) target = $region84
        $region83: #{tpu_custom_call.1} parent=63 // pred_region
          %s1100 = ssub.s32 32, 32
          %1101 = vsyncadd %s1092, %s1100
          %s1102 = sadd.s32 %s39, %s38
          %s1103 = smul.addr %s1102, 32
          %s1104 = scalar_lea.hbm %s11, %s1103
          %s1106 = sshll.u32 %s1095, 4
          %s1107 = int_to_ptr.vmem [resolvable:$true] %s1106
          %1109 = dma.vmem_to_hbm [thread:$0]  %s1107, 32, %s1104, %s1092
        $region84: #{tpu_custom_call.1} parent=63 // pred_fallthru
          _
      $region64: #{tpu_custom_call.1} parent=5 // pred_fallthru
        _
      %p1110 = scmp.le.s32.totalorder 2, %s29
      // Predicated region
      $region85: #{tpu_custom_call.1} parent=5 // pred_check
        %p1111 = pneg %p1110
      $region86: #{tpu_custom_call.1} parent=5 // pred_check_branch
        %1113 = sbr.rel (%p1111) target = $region88
      $region87: #{tpu_custom_call.1} parent=5 // pred_region
        %s1114 = ssub.s32 %s29, 2
        // Predicated region
        $region89: #{tpu_custom_call.1} parent=87 // pred_check
          %p1115 = pneg %p344
        $region90: #{tpu_custom_call.1} parent=87 // pred_check_branch
          %1117 = sbr.rel (%p1115) target = $region92
        $region91: #{tpu_custom_call.1} parent=87 // pred_region
          %s1118 = sand.u32 %s329, 1
          %s1119 = scalar_lea.sflag [#allocation4], %s1118
          %s1120 = sand.u32 %s329, 1
          %s1121 = smul.addr %s1120, 2
          %s1122 = scalar_lea.vmem [#allocation10], %s1121
          %1123 = dma.done %s1119, 32
        $region92: #{tpu_custom_call.1} parent=87 // pred_fallthru
          _
      $region88: #{tpu_custom_call.1} parent=5 // pred_fallthru
        _
    $region6: #{tpu_custom_call.1} parent=1 // loop_footer
      %s33 = sadd.s32 1, %s29
    $region7: #{tpu_custom_call.1} parent=1 // loop_footer_branch
      %28 = sbr.rel target = $region3
    $region8: #{tpu_custom_call.1} parent=1 // loop_exit
      _
    %1124 = vsyncpa [#allocation3], 1
    %s1125 = scalar_lea.sflag [#allocation3], 1
    %1126 = vsyncpa %s1125, 1
    %1127 = vsyncpa [#allocation6], 1
    %s1128 = scalar_lea.sflag [#allocation6], 1
    %1129 = vsyncpa %s1128, 1
    %1130 = vsyncpa [#allocation9], 1
    %s1131 = scalar_lea.sflag [#allocation9], 1
    %1132 = vsyncpa %s1131, 1
    %1133 = vsyncpa [#allocation4], 1
    %s1134 = scalar_lea.sflag [#allocation4], 1
    %1135 = vsyncpa %s1134, 1

</llo_original>
